<compile_context>
chip_gen: v7x
topology: tpu7x:2x2x1
jax: 0.10.0
libtpu: 0.0.40
codegen_flags: <defaults>
</compile_context>

<pallas_src>
import functools
import math

import jax
import jax.numpy as jnp
import numpy as np
from jax.experimental import pallas as pl
from jax.experimental.pallas import tpu as pltpu

LANE = 128
SUBLANE = 8
NEG_INF = -1e9
LN_EPS = 1e-5  # PyTorch nn.LayerNorm default


# ----------------------------------------------------------------------------
# small helpers
# ----------------------------------------------------------------------------
def _round_up(x, m):
    return (x + m - 1) // m * m


def _pad2(a, rows, cols):
    return jnp.pad(a, ((0, rows - a.shape[0]), (0, cols - a.shape[1])))


def _pad_last(a, cols):
    pad = [(0, 0)] * (a.ndim - 1) + [(0, cols - a.shape[-1])]
    return jnp.pad(a, pad)


def _choose_tm(m):
    """Row tile: multiple of 8, <= 512, with >= 2 grid steps when possible."""
    if m % SUBLANE != 0:
        return m  # full-dim block is always legal
    for t in (512, 256, 128, 64, 32, 16, 8):
        if t <= m and m % t == 0 and m // t >= 2:
            return t
    return m


def _vmem_budget(per_step_bytes):
    # double-buffered tiles + headroom, clamped to v7x's 64 MiB physical VMEM.
    return int(min(max(3 * per_step_bytes + (8 << 20), 32 << 20), 64 << 20))


def get_sinusoid_encoding_table(n_seq, d_embed):
    def cal_angle(position, i_embed):
        return position / np.power(10000, 2 * (i_embed // 2) / d_embed)

    def get_posi_angle_vec(position):
        return [cal_angle(position, i) for i in range(d_embed)]

    tbl = np.array([get_posi_angle_vec(i) for i in range(n_seq)])
    tbl[:, 0::2] = np.sin(tbl[:, 0::2])
    tbl[:, 1::2] = np.cos(tbl[:, 1::2])
    return tbl


# ----------------------------------------------------------------------------
# Pallas kernels
# ----------------------------------------------------------------------------
def _linear_kernel(x_ref, wt_ref, b_ref, o_ref):
    # y = x @ W^T + b  (bf16 operands, f32 accumulation)
    x = x_ref[...].astype(jnp.bfloat16)
    y = jnp.dot(x, wt_ref[...], preferred_element_type=jnp.float32)
    o_ref[...] = (y + b_ref[...]).astype(o_ref.dtype)


def _attn_kernel(q_ref, kt_ref, v_ref, m_ref, ctx_ref, attn_ref, *, scale):
    q = q_ref[...].astype(jnp.bfloat16)
    kt = kt_ref[...].astype(jnp.bfloat16)
    s = jnp.dot(q, kt, preferred_element_type=jnp.float32) * scale
    s = jnp.where(m_ref[...] > 0, NEG_INF, s)
    s = s - jnp.max(s, axis=-1, keepdims=True)
    p = jnp.exp(s)
    attn = p / jnp.sum(p, axis=-1, keepdims=True)
    attn_ref[...] = attn.astype(attn_ref.dtype)
    ctx = jnp.dot(attn.astype(jnp.bfloat16), v_ref[...].astype(jnp.bfloat16),
                  preferred_element_type=jnp.float32)
    ctx_ref[...] = ctx.astype(ctx_ref.dtype)


def _proj_ln_kernel(ctx_ref, res_ref, wot_ref, bo_ref, g_ref, be_ref, o_ref,
                    *, d_model):
    inv_d = 1.0 / d_model
    ctx = ctx_ref[...].astype(jnp.bfloat16)
    y = jnp.dot(ctx, wot_ref[...], preferred_element_type=jnp.float32) + bo_ref[...]
    z = y + res_ref[...]                      # padded channels of z are exactly 0
    mean = jnp.sum(z, axis=-1, keepdims=True) * inv_d
    var = jnp.sum(z * z, axis=-1, keepdims=True) * inv_d - mean * mean
    zn = (z - mean) * jax.lax.rsqrt(var + LN_EPS)
    o_ref[...] = (zn * g_ref[...] + be_ref[...]).astype(o_ref.dtype)


def _ffn_kernel(x_ref, w1t_ref, b1_ref, w2t_ref, b2_ref, g_ref, be_ref, o_ref,
                *, d_model):
    inv_d = 1.0 / d_model
    x = x_ref[...]
    h = jnp.dot(x.astype(jnp.bfloat16), w1t_ref[...],
                preferred_element_type=jnp.float32) + b1_ref[...]
    h = jnp.maximum(h, 0.0)
    y = jnp.dot(h.astype(jnp.bfloat16), w2t_ref[...],
                preferred_element_type=jnp.float32) + b2_ref[...]
    z = y + x
    mean = jnp.sum(z, axis=-1, keepdims=True) * inv_d
    var = jnp.sum(z * z, axis=-1, keepdims=True) * inv_d - mean * mean
    zn = (z - mean) * jax.lax.rsqrt(var + LN_EPS)
    o_ref[...] = (zn * g_ref[...] + be_ref[...]).astype(o_ref.dtype)


# ----------------------------------------------------------------------------
# pallas_call wrappers
# ----------------------------------------------------------------------------
@jax.jit
def _linear(x2, wt_p, b_p):
    m, din = x2.shape
    dout = wt_p.shape[1]
    tm = _choose_tm(m)
    grid = (m // tm,)
    cost = pl.CostEstimate(flops=2 * m * din * dout, transcendentals=0,
                           bytes_accessed=4 * m * (din + dout) + 2 * din * dout)
    vmem = _vmem_budget(4 * tm * (din + dout) + 2 * din * dout + 4 * dout)
    return pl.pallas_call(
        _linear_kernel,
        out_shape=jax.ShapeDtypeStruct((m, dout), jnp.float32),
        grid_spec=pltpu.PrefetchScalarGridSpec(
            num_scalar_prefetch=0,
            grid=grid,
            in_specs=[
                pl.BlockSpec((tm, din), lambda i: (i, 0)),
                pl.BlockSpec((din, dout), lambda i: (0, 0)),
                pl.BlockSpec((1, dout), lambda i: (0, 0)),
            ],
            out_specs=pl.BlockSpec((tm, dout), lambda i: (i, 0)),
        ),
        compiler_params=pltpu.CompilerParams(
            dimension_semantics=(("parallel",) if grid[0] > 1 else ("arbitrary",)),
            vmem_limit_bytes=vmem),
        cost_estimate=cost,
    )(x2, wt_p, b_p)


@jax.jit
def _attention(q4, k4, v4, mask_i32):
    b, h, sq, dk = q4.shape
    sk, dv = k4.shape[2], v4.shape[3]
    kt = jnp.swapaxes(k4, -1, -2)  # (B, H, dk, Sk): avoids an in-kernel transpose
    kernel = functools.partial(_attn_kernel, scale=1.0 / math.sqrt(dk))
    ctx, attn = pl.pallas_call(
        kernel,
        out_shape=(jax.ShapeDtypeStruct((b, h, sq, dv), jnp.float32),
                   jax.ShapeDtypeStruct((b, h, sq, sk), jnp.float32)),
        grid_spec=pltpu.PrefetchScalarGridSpec(
            num_scalar_prefetch=0,
            grid=(b, h),
            in_specs=[
                pl.BlockSpec((None, None, sq, dk), lambda bi, hi: (bi, hi, 0, 0)),
                pl.BlockSpec((None, None, dk, sk), lambda bi, hi: (bi, hi, 0, 0)),
                pl.BlockSpec((None, None, sk, dv), lambda bi, hi: (bi, hi, 0, 0)),
                pl.BlockSpec((None, sq, sk), lambda bi, hi: (bi, 0, 0)),
            ],
            out_specs=(
                pl.BlockSpec((None, None, sq, dv), lambda bi, hi: (bi, hi, 0, 0)),
                pl.BlockSpec((None, None, sq, sk), lambda bi, hi: (bi, hi, 0, 0)),
            ),
        ),
        compiler_params=pltpu.CompilerParams(
            dimension_semantics=("parallel", "parallel")),
    )(q4, kt, v4, mask_i32)
    return ctx, attn


@functools.partial(jax.jit, static_argnames=("d_model",))
def _proj_ln(ctx2p, res2p, wot_p, bo_p, g_p, be_p, *, d_model):
    m, cp = ctx2p.shape
    dp = wot_p.shape[1]
    tm = _choose_tm(m)
    grid = (m // tm,)
    kernel = functools.partial(_proj_ln_kernel, d_model=d_model)
    cost = pl.CostEstimate(flops=2 * m * cp * dp, transcendentals=m,
                           bytes_accessed=4 * m * (cp + 2 * dp) + 2 * cp * dp)
    vmem = _vmem_budget(4 * tm * (cp + 2 * dp) + 2 * cp * dp + 12 * dp)
    return pl.pallas_call(
        kernel,
        out_shape=jax.ShapeDtypeStruct((m, dp), jnp.float32),
        grid_spec=pltpu.PrefetchScalarGridSpec(
            num_scalar_prefetch=0,
            grid=grid,
            in_specs=[
                pl.BlockSpec((tm, cp), lambda i: (i, 0)),
                pl.BlockSpec((tm, dp), lambda i: (i, 0)),
                pl.BlockSpec((cp, dp), lambda i: (0, 0)),
                pl.BlockSpec((1, dp), lambda i: (0, 0)),
                pl.BlockSpec((1, dp), lambda i: (0, 0)),
                pl.BlockSpec((1, dp), lambda i: (0, 0)),
            ],
            out_specs=pl.BlockSpec((tm, dp), lambda i: (i, 0)),
        ),
        compiler_params=pltpu.CompilerParams(
            dimension_semantics=(("parallel",) if grid[0] > 1 else ("arbitrary",)),
            vmem_limit_bytes=vmem),
        cost_estimate=cost,
    )(ctx2p, res2p, wot_p, bo_p, g_p, be_p)


@functools.partial(jax.jit, static_argnames=("d_model",))
def _poswise_ffn(x2p, w1t_p, b1_p, w2t_p, b2_p, g_p, be_p, *, d_model):
    m, dp = x2p.shape
    fp = w1t_p.shape[1]
    tm = _choose_tm(m)
    grid = (m // tm,)
    kernel = functools.partial(_ffn_kernel, d_model=d_model)
    cost = pl.CostEstimate(flops=4 * m * dp * fp, transcendentals=m,
                           bytes_accessed=8 * m * dp + 4 * dp * fp)
    vmem = _vmem_budget(8 * tm * dp + 4 * tm * fp + 4 * dp * fp + 12 * dp + 4 * fp)
    return pl.pallas_call(
        kernel,
        out_shape=jax.ShapeDtypeStruct((m, dp), jnp.float32),
        grid_spec=pltpu.PrefetchScalarGridSpec(
            num_scalar_prefetch=0,
            grid=grid,
            in_specs=[
                pl.BlockSpec((tm, dp), lambda i: (i, 0)),
                pl.BlockSpec((dp, fp), lambda i: (0, 0)),
                pl.BlockSpec((1, fp), lambda i: (0, 0)),
                pl.BlockSpec((fp, dp), lambda i: (0, 0)),
                pl.BlockSpec((1, dp), lambda i: (0, 0)),
                pl.BlockSpec((1, dp), lambda i: (0, 0)),
                pl.BlockSpec((1, dp), lambda i: (0, 0)),
            ],
            out_specs=pl.BlockSpec((tm, dp), lambda i: (i, 0)),
        ),
        compiler_params=pltpu.CompilerParams(
            dimension_semantics=(("parallel",) if grid[0] > 1 else ("arbitrary",)),
            vmem_limit_bytes=vmem),
        cost_estimate=cost,
    )(x2p, w1t_p, b1_p, w2t_p, b2_p, g_p, be_p)


# ----------------------------------------------------------------------------
# Decoder forward (Pallas path)
# ----------------------------------------------------------------------------
def _embed_and_masks(params, dec_inputs, enc_inputs, cfg):
    b, sd = dec_inputs.shape
    se = enc_inputs.shape[1]
    i_pad = cfg["i_pad"]
    positions = (jnp.arange(1, sd + 1, dtype=jnp.int32)[None, :]
                 * (dec_inputs != i_pad).astype(jnp.int32))
    # TODO(synk): embedding gathers done in plain JAX (no clean BlockSpec pattern here).
    x = params["dec_emb"][dec_inputs] + params["pos_emb"][positions]

    dec_pad = jnp.broadcast_to((dec_inputs == i_pad)[:, None, :], (b, sd, sd))
    subseq = jnp.triu(jnp.ones((sd, sd), jnp.int32), k=1)[None, :, :]
    self_mask = (dec_pad.astype(jnp.int32) + subseq) > 0
    cross_mask = jnp.broadcast_to((enc_inputs == i_pad)[:, None, :], (b, sd, se))
    return x.astype(jnp.float32), self_mask, cross_mask


def _mha_forward(x_q, x_kv, p, mask_i32, cfg):
    d, h, dk, dv = cfg["d_embed"], cfg["n_heads"], cfg["d_k"], cfg["d_v"]
    b, sq, _ = x_q.shape
    sk = x_kv.shape[1]
    dp = p["q"]["wt_p"].shape[0]

    xq2 = _pad_last(x_q.reshape(b * sq, d), dp)
    xkv2 = _pad_last(x_kv.reshape(b * sk, d), dp)

    q = _linear(xq2, p["q"]["wt_p"], p["q"]["b_p"])[:, : h * dk]
    k = _linear(xkv2, p["k"]["wt_p"], p["k"]["b_p"])[:, : h * dk]
    v = _linear(xkv2, p["v"]["wt_p"], p["v"]["b_p"])[:, : h * dv]

    q4 = q.reshape(b, sq, h, dk).transpose(0, 2, 1, 3)
    k4 = k.reshape(b, sk, h, dk).transpose(0, 2, 1, 3)
    v4 = v.reshape(b, sk, h, dv).transpose(0, 2, 1, 3)

    ctx, attn = _attention(q4, k4, v4, mask_i32)

    ctx2 = ctx.transpose(0, 2, 1, 3).reshape(b * sq, h * dv)
    ctx2p = _pad_last(ctx2, p["o"]["wt_p"].shape[0])
    outp = _proj_ln(ctx2p, xq2, p["o"]["wt_p"], p["o"]["b_p"],
                    p["ln"]["g_p"], p["ln"]["b_p"], d_model=d)
    return outp[:, :d].reshape(b, sq, d), attn


def _ffn_forward(x, p, cfg):
    d = cfg["d_embed"]
    b, s, _ = x.shape
    dp = p["c1"]["wt_p"].shape[0]
    x2p = _pad_last(x.reshape(b * s, d), dp)
    outp = _poswise_ffn(x2p, p["c1"]["wt_p"], p["c1"]["b_p"],
                        p["c2"]["wt_p"], p["c2"]["b_p"],
                        p["ln"]["g_p"], p["ln"]["b_p"], d_model=d)
    return outp[:, :d].reshape(b, s, d)


def decoder_forward(params, dec_inputs, enc_inputs, enc_outputs, cfg):
    x, self_mask, cross_mask = _embed_and_masks(params, dec_inputs, enc_inputs, cfg)
    self_mask_i = self_mask.astype(jnp.int32)
    cross_mask_i = cross_mask.astype(jnp.int32)

    out = x
    self_attns, cross_attns = [], []
    for lp in params["layers"]:
        out, sa = _mha_forward(out, out, lp["self"], self_mask_i, cfg)
        out, ca = _mha_forward(out, enc_outputs, lp["cross"], cross_mask_i, cfg)
        out = _ffn_forward(out, lp["ffn"], cfg)
        self_attns.append(sa)
        cross_attns.append(ca)
    return out, self_attns, cross_attns


# ----------------------------------------------------------------------------
# Parameters
# ----------------------------------------------------------------------------
def init_params(key, cfg):
    d, dff = cfg["d_embed"], cfg["d_ff"]
    h, dk, dv = cfg["n_heads"], cfg["d_k"], cfg["d_v"]
    assert dk == dv, "module assumes d_k == d_v"
    dp = _round_up(d, LANE)
    qkp = _round_up(h * dk, LANE)
    vp = _round_up(h * dv, LANE)
    fp = _round_up(dff, LANE)

    keys = jax.random.split(key, 1 + cfg["n_layer"])
    dec_emb = jax.random.normal(keys[0], (cfg["n_dec_vocab"], d), jnp.float32)
    pos_emb = jnp.asarray(get_sinusoid_encoding_table(cfg["n_dec_seq"] + 1, d),
                          jnp.float32)

    def make_linear(k, fan_in, fan_out, rows_p, cols_p):
        kw, kb = jax.random.split(k)
        w = jax.random.normal(kw, (fan_out, fan_in), jnp.float32) * 0.1
        w = w.astype(jnp.bfloat16).astype(jnp.float32)   # weights stored in bf16
        bias = jax.random.normal(kb, (fan_out,), jnp.float32) * 0.1
        return {"wt_p": _pad2(w.T, rows_p, cols_p).astype(jnp.bfloat16),
                "b_p": _pad_last(bias, cols_p)[None, :],
                "w": w, "b": bias}

    def make_ln():
        g = jnp.ones((d,), jnp.float32)
        bb = jnp.zeros((d,), jnp.float32)
        return {"g_p": _pad_last(g, dp)[None, :], "b_p": _pad_last(bb, dp)[None, :],
                "g": g, "b": bb}

    def make_mha(k):
        k0, k1, k2, k3 = jax.random.split(k, 4)
        return {"q": make_linear(k0, d, h * dk, dp, qkp),
                "k": make_linear(k1, d, h * dk, dp, qkp),
                "v": make_linear(k2, d, h * dk, dp, vp),
                "o": make_linear(k3, h * dv, d, vp, dp),
                "ln": make_ln()}

    def make_ffn(k):
        k0, k1 = jax.random.split(k)
        return {"c1": make_linear(k0, d, dff, dp, fp),
                "c2": make_linear(k1, dff, d, fp, dp),
                "ln": make_ln()}

    layers = []
    for i in range(cfg["n_layer"]):
        ks, kc, kf = jax.random.split(keys[1 + i], 3)
        layers.append({"self": make_mha(ks), "cross": make_mha(kc),
                       "ffn": make_ffn(kf)})

    return {"dec_emb": dec_emb, "pos_emb": pos_emb, "layers": layers}


# ----------------------------------------------------------------------------
# Pure-JAX reference (mirrors the PyTorch forward; matmul operands cast to
# bf16 with f32 accumulation to match the kernels' precision policy)
# ----------------------------------------------------------------------------
def _bf16_mm(a, b):
    return jnp.matmul(a.astype(jnp.bfloat16), b.astype(jnp.bfloat16),
                      preferred_element_type=jnp.float32)


def _ref_ln(z, g, b):
    mean = jnp.mean(z, axis=-1, keepdims=True)
    var = jnp.mean((z - mean) ** 2, axis=-1, keepdims=True)
    return (z - mean) / jnp.sqrt(var + LN_EPS) * g + b


def _ref_mha(xq, xkv, p, mask_bool, cfg):
    h, dk, dv = cfg["n_heads"], cfg["d_k"], cfg["d_v"]
    b, sq, _ = xq.shape
    sk = xkv.shape[1]
    q = _bf16_mm(xq, p["q"]["w"].T) + p["q"]["b"]
    k = _bf16_mm(xkv, p["k"]["w"].T) + p["k"]["b"]
    v = _bf16_mm(xkv, p["v"]["w"].T) + p["v"]["b"]
    q = q.reshape(b, sq, h, dk).transpose(0, 2, 1, 3)
    k = k.reshape(b, sk, h, dk).transpose(0, 2, 1, 3)
    v = v.reshape(b, sk, h, dv).transpose(0, 2, 1, 3)
    scores = jnp.einsum("bhqd,bhkd->bhqk", q.astype(jnp.bfloat16),
                        k.astype(jnp.bfloat16),
                        preferred_element_type=jnp.float32) / np.sqrt(dk)
    scores = jnp.where(mask_bool[:, None, :, :], NEG_INF, scores)
    attn = jax.nn.softmax(scores, axis=-1)
    ctx = jnp.einsum("bhqk,bhkd->bhqd", attn.astype(jnp.bfloat16),
                     v.astype(jnp.bfloat16), preferred_element_type=jnp.float32)
    ctx = ctx.transpose(0, 2, 1, 3).reshape(b, sq, h * dv)
    out = _bf16_mm(ctx, p["o"]["w"].T) + p["o"]["b"]
    return _ref_ln(out + xq, p["ln"]["g"], p["ln"]["b"]), attn


def _ref_ffn(x, p):
    h = jnp.maximum(_bf16_mm(x, p["c1"]["w"].T) + p["c1"]["b"], 0.0)
    y = _bf16_mm(h, p["c2"]["w"].T) + p["c2"]["b"]
    return _ref_ln(y + x, p["ln"]["g"], p["ln"]["b"])


def reference_decoder(params, dec_inputs, enc_inputs, enc_outputs, cfg):
    x, self_mask, cross_mask = _embed_and_masks(params, dec_inputs, enc_inputs, cfg)
    out = x
    sas, cas = [], []
    for lp in params["layers"]:
        out, sa = _ref_mha(out, out, lp["self"], self_mask, cfg)
        out, ca = _ref_mha(out, enc_outputs, lp["cross"], cross_mask, cfg)
        out = _ref_ffn(out, lp["ffn"])
        sas.append(sa)
        cas.append(ca)
    return out, sas, cas


# ----------------------------------------------------------------------------
# main
# ----------------------------------------------------------------------------
if __name__ == "__main__":
    cfg = dict(n_dec_vocab=32, n_dec_seq=8, n_enc_seq=8,
               d_embed=32, d_ff=64, n_heads=2, d_k=16, d_v=16,
               n_layer=2, i_pad=0, dropout=0.0)
    B, SD, SE = 2, cfg["n_dec_seq"], cfg["n_enc_seq"]

    key = jax.random.PRNGKey(0)
    kp, kd, ke, ko = jax.random.split(key, 4)
    params = init_params(kp, cfg)

    dec_inputs = jax.random.randint(kd, (B, SD), 1, cfg["n_dec_vocab"])
    dec_inputs = dec_inputs.at[1, -2:].set(cfg["i_pad"])     # exercise pad mask
    enc_inputs = jax.random.randint(ke, (B, SE), 1, cfg["n_dec_vocab"])
    enc_inputs = enc_inputs.at[0, -3:].set(cfg["i_pad"])
    enc_outputs = jax.random.normal(ko, (B, SE, cfg["d_embed"]), jnp.float32)

    out, self_attns, cross_attns = decoder_forward(
        params, dec_inputs, enc_inputs, enc_outputs, cfg)
    out = jax.block_until_ready(out)

    ref_out, ref_sa, ref_ca = reference_decoder(
        params, dec_inputs, enc_inputs, enc_outputs, cfg)

    assert out.shape == (B, SD, cfg["d_embed"])
    assert len(self_attns) == cfg["n_layer"] and len(cross_attns) == cfg["n_layer"]
    err = float(jnp.max(jnp.abs(out - ref_out)))
    assert jnp.allclose(out, ref_out, atol=1e-2, rtol=1e-2), \
        f"decoder output mismatch vs reference (max abs err {err})"
    for a, r in zip(self_attns + cross_attns, ref_sa + ref_ca):
        assert a.shape == r.shape
        assert jnp.allclose(a, r, atol=1e-2, rtol=1e-2), "attention map mismatch"
    print("KERNEL_OK")
</pallas_src>

<mosaic_0001>
module attributes {stable_mosaic.version = 11 : i64} {
  func.func @_linear_kernel(%arg0: i32, %arg1: memref<8x128xf32, #tpu.memory_space<vmem>>, %arg2: memref<128x128xbf16, #tpu.memory_space<vmem>>, %arg3: memref<1x128xf32, #tpu.memory_space<vmem>>, %arg4: memref<8x128xf32, #tpu.memory_space<vmem>>) attributes {dimension_semantics = [#tpu.dimension_semantics<parallel>], iteration_bounds = array<i64: 2>, scalar_prefetch = 0 : i64, scratch_operands = 0 : i64, tpu.core_type = #tpu.core_type<tc>, window_params = [{transform_indices = @transform_0, window_bounds = array<i64: 8, 128>}, {pipeline_mode = #tpu.pipeline_mode<synchronous>, transform_indices = @transform_1, window_bounds = array<i64: 128, 128>}, {pipeline_mode = #tpu.pipeline_mode<synchronous>, transform_indices = @transform_2, window_bounds = array<i64: 1, 128>}, {transform_indices = @transform_3, window_bounds = array<i64: 8, 128>}]} {
    %c0 = arith.constant 0 : index
    %c0_0 = arith.constant 0 : index
    %0 = vector.load %arg1[%c0, %c0_0] : memref<8x128xf32, #tpu.memory_space<vmem>>, vector<8x128xf32>
    %1 = arith.truncf %0 : vector<8x128xf32> to vector<8x128xbf16>
    %c0_1 = arith.constant 0 : index
    %c0_2 = arith.constant 0 : index
    %2 = vector.load %arg2[%c0_1, %c0_2] : memref<128x128xbf16, #tpu.memory_space<vmem>>, vector<128x128xbf16>
    %cst = arith.constant dense<0.000000e+00> : vector<8x128xf32>
    %3 = tpu.matmul %1, %2, %cst {dimension_numbers = #tpu.dot_dimension_numbers<[1], [0], [0], [1], [0, 0, 1, 1], [], []>} : vector<8x128xbf16>, vector<128x128xbf16>, vector<8x128xf32> -> vector<8x128xf32>
    %c0_3 = arith.constant 0 : index
    %c0_4 = arith.constant 0 : index
    %4 = vector.load %arg3[%c0_3, %c0_4] : memref<1x128xf32, #tpu.memory_space<vmem>>, vector<1x128xf32>
    %5 = vector.broadcast %4 : vector<1x128xf32> to vector<8x128xf32>
    %6 = arith.addf %3, %5 : vector<8x128xf32>
    %c0_5 = arith.constant 0 : index
    %c0_6 = arith.constant 0 : index
    %7 = vector.load %arg4[%c0_5, %c0_6] : memref<8x128xf32, #tpu.memory_space<vmem>>, vector<8x128xf32>
    tpu.vector_store %arg4[%c0_5, %c0_6], %6 {strides = array<i32>} : memref<8x128xf32, #tpu.memory_space<vmem>>, vector<8x128xf32>,
    return
  }
  func.func @transform_0(%arg0: i32) -> (i32, i32) {
    %c0_i32 = arith.constant 0 : i32
    %c0_i32_0 = arith.constant 0 : i32
    return %arg0, %c0_i32 : i32, i32
  }
  func.func @transform_1(%arg0: i32) -> (i32, i32) {
    %c0_i32 = arith.constant 0 : i32
    %c0_i32_0 = arith.constant 0 : i32
    %c0_i32_1 = arith.constant 0 : i32
    return %c0_i32, %c0_i32_0 : i32, i32
  }
  func.func @transform_2(%arg0: i32) -> (i32, i32) {
    %c0_i32 = arith.constant 0 : i32
    %c0_i32_0 = arith.constant 0 : i32
    %c0_i32_1 = arith.constant 0 : i32
    return %c0_i32, %c0_i32_0 : i32, i32
  }
  func.func @transform_3(%arg0: i32) -> (i32, i32) {
    %c0_i32 = arith.constant 0 : i32
    %c0_i32_0 = arith.constant 0 : i32
    return %arg0, %c0_i32 : i32, i32
  }
}

</mosaic_0001>

<llo_original>
// kernel: _linear.1
$region0: #{_linear.1}
  #allocation0 [shape = 'u32[]', space=smem, size = 0x4, offset = 0x4, fixed_abs, tag = 'smem constant byte address 0x4 - core index']
  #allocation1 [shape = 'u32[144,128]{1,0:T(1,128)}', space=vmem, size = 0x12000, scoped, tag = 'internal scratch']
  %s0 = inlined_call_operand.hbm [shape: f32[16,128], index: 0, kind: input, shape index: {}]
  %s1 = inlined_call_operand.hbm [shape: bf16[128,128], index: 1, kind: input, shape index: {}]
  %s2 = inlined_call_operand.vmem [shape: f32[1,128], index: 2, kind: input, shape index: {}]
  %s3 = inlined_call_operand.hbm [shape: f32[16,128], index: 3, kind: output, shape index: {}]
  %s4 = sld [smem:[#allocation0]]
  $region53: #{_linear.1} parent=0
    _
  %s6 = ssub.s32 1, %s4
  %s7 = scalar_select 0, %s6, %s4
  $region1: #{_linear.1} parent=0
    #allocation2 [shape = 'u8[8192]{0}', space=vmem, size = 0x2000, scoped, tag = 'input window, operand 0']
    #allocation3 [shape = 's32[2]{0}', space=sflag, size = 0x8, scoped, tag = 'scoped memory for _linear.1']
    #allocation4 [shape = 's32[2]{0}', space=sflag, size = 0x8, scoped, tag = 'scoped memory for _linear.1']
    #allocation5 [shape = 'u8[32768]{0}', space=vmem, size = 0x8000, scoped, tag = 'input window, operand 1, single buffered']
    #allocation6 [shape = 's32[1]{0}', space=sflag, size = 0x4, scoped, tag = 'scoped memory for _linear.1']
    #allocation7 [shape = 'u8[8192]{0}', space=vmem, size = 0x2000, scoped, tag = 'output window, operand 0']
    %8 = vsyncpa [#allocation3], 0
    %s9 = scalar_lea.sflag [#allocation3], 1
    %10 = vsyncpa %s9, 0
    %11 = vsyncpa [#allocation6], 0
    %12 = vsyncpa [#allocation4], 0
    %s13 = scalar_lea.sflag [#allocation4], 1
    %14 = vsyncpa %s13, 0
    loop: start=0, step=1, limit=4
    $region2: #{_linear.1} parent=1 // loop_pre_header
      _
    $region3: #{_linear.1} parent=1 // loop_header
      %s16 = sphi 0, %s20
      %p17 = scmp.ge.s32.totalorder %s16, 4
      %s26 = sphi 0, %s28
      %s29 = sphi 0, %s26
      %s30 = sphi 0, %s29
      %s46 = sphi 0, %s30
      %s50 = sphi 0, %s50
      %s52 = sphi 0, %s50
      %s53 = sphi 0, %s52
      %s67 = sphi 0, %s53
      %s71 = sphi 0, %s71
      %s73 = sphi 0, %s71
      %s74 = sphi 0, %s73
      %s88 = sphi 0, %s74
      %s94 = sphi 0, %s96
      %s97 = sphi 0, %s94
      %s98 = sphi 0, %s97
      %s114 = sphi 0, %s98
    $region4: #{_linear.1} parent=1 // loop_header_branch
      %19 = sbr.rel (%p17) target = $region8
    $region5: #{_linear.1} parent=1 // loop_body
      %s21 = ssub.s32 %s16, 1
      %s22 = ssub.s32 %s16, 2
      %s23 = sadd.s32 %s16, 1
      %s24 = ssub.s32 %s16, %s23
      %p25 = scmp.eq.s32.totalorder %s24, 0
      %s27 = sadd.s32 %s26, 1
      %s28 = scalar_select %p25, %s26, %s27
      %p31 = pneg %p25
      %p32 = scmp.eq.s32.totalorder %s16, 1
      %p33 = por %p31, %p32
      %p34 = scmp.ne.s32.totalorder %s26, %s29
      %p35 = scmp.eq.s32.totalorder %s16, 0
      %p36 = por %p34, %p35
      %p37 = scmp.ne.s32.totalorder %s26, %s29
      %p38 = scmp.eq.s32.totalorder %s21, 1
      %p39 = por %p37, %p38
      %p40 = scmp.ne.s32.totalorder %s29, %s30
      %p41 = scmp.eq.s32.totalorder %s21, 0
      %p42 = por %p40, %p41
      %p43 = scmp.ne.s32.totalorder %s29, %s30
      %p44 = scmp.eq.s32.totalorder %s22, 1
      %p45 = por %p43, %p44
      %p47 = scmp.ne.s32.totalorder %s30, %s46
      %p48 = scmp.eq.s32.totalorder %s22, 0
      %p49 = por %p47, %p48
      %s51 = sadd.s32 %s50, 1
      %p54 = scmp.eq.s32.totalorder %s16, 1
      %p55 = scmp.ne.s32.totalorder %s50, %s52
      %p56 = scmp.eq.s32.totalorder %s16, 0
      %p57 = por %p55, %p56
      %p58 = scmp.ne.s32.totalorder %s50, %s52
      %p59 = scmp.eq.s32.totalorder %s21, 1
      %p60 = por %p58, %p59
      %p61 = scmp.ne.s32.totalorder %s52, %s53
      %p62 = scmp.eq.s32.totalorder %s21, 0
      %p63 = por %p61, %p62
      %p64 = scmp.ne.s32.totalorder %s52, %s53
      %p65 = scmp.eq.s32.totalorder %s22, 1
      %p66 = por %p64, %p65
      %p68 = scmp.ne.s32.totalorder %s53, %s67
      %p69 = scmp.eq.s32.totalorder %s22, 0
      %p70 = por %p68, %p69
      %s72 = sadd.s32 %s71, 1
      %p75 = scmp.eq.s32.totalorder %s16, 1
      %p76 = scmp.ne.s32.totalorder %s71, %s73
      %p77 = scmp.eq.s32.totalorder %s16, 0
      %p78 = por %p76, %p77
      %p79 = scmp.ne.s32.totalorder %s71, %s73
      %p80 = scmp.eq.s32.totalorder %s21, 1
      %p81 = por %p79, %p80
      %p82 = scmp.ne.s32.totalorder %s73, %s74
      %p83 = scmp.eq.s32.totalorder %s21, 0
      %p84 = por %p82, %p83
      %p85 = scmp.ne.s32.totalorder %s73, %s74
      %p86 = scmp.eq.s32.totalorder %s22, 1
      %p87 = por %p85, %p86
      %p89 = scmp.ne.s32.totalorder %s74, %s88
      %p90 = scmp.eq.s32.totalorder %s22, 0
      %p91 = por %p89, %p90
      %s92 = ssub.s32 %s16, %s23
      %p93 = scmp.eq.s32.totalorder %s92, 0
      %s95 = sadd.s32 %s94, 1
      %s96 = scalar_select %p93, %s94, %s95
      %p99 = pneg %p93
      %p100 = scmp.eq.s32.totalorder %s16, 1
      %p101 = por %p99, %p100
      %p102 = scmp.ne.s32.totalorder %s94, %s97
      %p103 = scmp.eq.s32.totalorder %s16, 0
      %p104 = por %p102, %p103
      %p105 = scmp.ne.s32.totalorder %s94, %s97
      %p106 = scmp.eq.s32.totalorder %s21, 1
      %p107 = por %p105, %p106
      %p108 = scmp.ne.s32.totalorder %s97, %s98
      %p109 = scmp.eq.s32.totalorder %s21, 0
      %p110 = por %p108, %p109
      %p111 = scmp.ne.s32.totalorder %s97, %s98
      %p112 = scmp.eq.s32.totalorder %s22, 1
      %p113 = por %p111, %p112
      %p115 = scmp.ne.s32.totalorder %s98, %s114
      %p116 = scmp.eq.s32.totalorder %s22, 0
      %p117 = por %p115, %p116
      %p118 = scmp.le.s32.totalorder 1, %s16
      %p119 = scmp.lt.s32.totalorder %s16, 3
      %p120 = pnand %p118, %p119
      %p121 = pneg %p120
      // Predicated region
      $region9: #{_linear.1} parent=5 // pred_check
        _
      $region10: #{_linear.1} parent=5 // pred_check_branch
        %123 = sbr.rel (%p120) target = $region12
      $region11: #{_linear.1} parent=5 // pred_region
        %s124 = ssub.s32 %s16, 1
        // Predicated region
        $region13: #{_linear.1} parent=11 // pred_check
          %p125 = pneg %p63
        $region14: #{_linear.1} parent=11 // pred_check_branch
          %127 = sbr.rel (%p125) target = $region16
        $region15: #{_linear.1} parent=11 // pred_region
          %s129 = ssub.s32 1024, 1024
          %130 = vsyncadd [#allocation6], %s129
          %s131 = sshll.u32 [#allocation5], 4
          %s132 = int_to_ptr.vmem [resolvable:$true] %s131
          %137 = dma.hbm_to_vmem [thread:$0]  %s1, 1024, %s132, [#allocation6], 64, 64, 4
        $region16: #{_linear.1} parent=11 // pred_fallthru
          _
        // Predicated region
        $region17: #{_linear.1} parent=11 // pred_check
          %p138 = pneg %p84
        $region18: #{_linear.1} parent=11 // pred_check_branch
          %140 = sbr.rel (%p138) target = $region20
        $region19: #{_linear.1} parent=11 // pred_region
          _
        $region20: #{_linear.1} parent=11 // pred_fallthru
          _
      $region12: #{_linear.1} parent=5 // pred_fallthru
        _
      %p141 = scmp.lt.s32.totalorder %s16, 2
      // Predicated region
      $region21: #{_linear.1} parent=5 // pred_check
        %p142 = pneg %p141
      $region22: #{_linear.1} parent=5 // pred_check_branch
        %144 = sbr.rel (%p142) target = $region24
      $region23: #{_linear.1} parent=5 // pred_region
        // Predicated region
        $region25: #{_linear.1} parent=23 // pred_check
          %p145 = pneg %p36
        $region26: #{_linear.1} parent=23 // pred_check_branch
          %147 = sbr.rel (%p145) target = $region28
        $region27: #{_linear.1} parent=23 // pred_region
          %s148 = sand.u32 %s26, 1
          %s149 = scalar_lea.sflag [#allocation3], %s148
          %s150 = sand.u32 %s26, 1
          %s151 = smul.addr %s150, 8
          %s152 = scalar_lea.vmem [#allocation2], %s151
          %s154 = ssub.s32 128, 128
          %155 = vsyncadd %s149, %s154
          %s156 = smul.addr %s16, 128
          %s157 = scalar_lea.hbm %s0, %s156
          %s159 = sshll.u32 %s152, 4
          %s160 = int_to_ptr.vmem [resolvable:$true] %s159
          %162 = dma.hbm_to_vmem [thread:$0]  %s157, 128, %s160, %s149
        $region28: #{_linear.1} parent=23 // pred_fallthru
          _
      $region24: #{_linear.1} parent=5 // pred_fallthru
        _
      %p163 = scmp.le.s32.totalorder 1, %s16
      %p164 = scmp.lt.s32.totalorder %s16, 3
      %p165 = pnand %p163, %p164
      %p166 = pneg %p165
      // Predicated region
      $region29: #{_linear.1} parent=5 // pred_check
        _
      $region30: #{_linear.1} parent=5 // pred_check_branch
        %168 = sbr.rel (%p165) target = $region32
      $region31: #{_linear.1} parent=5 // pred_region
        %s169 = ssub.s32 %s16, 1
        %s170 = sand.u32 %s29, 1
        %s171 = scalar_lea.sflag [#allocation3], %s170
        %s172 = sand.u32 %s29, 1
        %s173 = smul.addr %s172, 8
        %s174 = scalar_lea.vmem [#allocation2], %s173
        // Predicated region
        $region33: #{_linear.1} parent=31 // pred_check
          %p175 = pneg %p42
        $region34: #{_linear.1} parent=31 // pred_check_branch
          %177 = sbr.rel (%p175) target = $region36
        $region35: #{_linear.1} parent=31 // pred_region
          %178 = dma.done %s171, 128
        $region36: #{_linear.1} parent=31 // pred_fallthru
          _
        // Predicated region
        $region37: #{_linear.1} parent=31 // pred_check
          %p179 = pneg %p63
        $region38: #{_linear.1} parent=31 // pred_check_branch
          %181 = sbr.rel (%p179) target = $region40
        $region39: #{_linear.1} parent=31 // pred_region
          %182 = dma.done [#allocation6], 1024
        $region40: #{_linear.1} parent=31 // pred_fallthru
          _
        %s183 = sand.u32 %s29, 1
        %s184 = scalar_lea.sflag [#allocation3], %s183
        %s185 = sand.u32 %s29, 1
        %s186 = smul.addr %s185, 8
        %s187 = scalar_lea.vmem [#allocation2], %s186
        %p188 = pneg %p42
        %p189 = pneg %p39
        %p190 = pneg %p63
        %p191 = pneg %p60
        %p192 = pneg %p84
        %p193 = pneg %p81
        %p194 = pneg %p110
        %p195 = pneg %p107
        %s196 = sand.u32 %s97, 1
        %s197 = scalar_lea.sflag [#allocation4], %s196
        %s198 = sand.u32 %s97, 1
        %s199 = smul.addr %s198, 8
        %s200 = scalar_lea.vmem [#allocation7], %s199
        %v202 = vld [vmem:[%s174] sm:$0xff]
        %v203 = vpack.c.bf16 %v202, %v202
        %v204 = vld [vmem:[#allocation5] sm:$0xf]
        %v205 = vld [vmem:[#allocation5 + $0x4] sm:$0xf]
        %v206 = vld [vmem:[#allocation5 + $0x8] sm:$0xf]
        %v207 = vld [vmem:[#allocation5 + $0xc] sm:$0xf]
        %v208 = vld [vmem:[#allocation5 + $0x10] sm:$0xf]
        %v209 = vld [vmem:[#allocation5 + $0x14] sm:$0xf]
        %v210 = vld [vmem:[#allocation5 + $0x18] sm:$0xf]
        %v211 = vld [vmem:[#allocation5 + $0x1c] sm:$0xf]
        %v212 = vld [vmem:[#allocation5 + $0x20] sm:$0xf]
        %v213 = vld [vmem:[#allocation5 + $0x24] sm:$0xf]
        %v214 = vld [vmem:[#allocation5 + $0x28] sm:$0xf]
        %v215 = vld [vmem:[#allocation5 + $0x2c] sm:$0xf]
        %v216 = vld [vmem:[#allocation5 + $0x30] sm:$0xf]
        %v217 = vld [vmem:[#allocation5 + $0x34] sm:$0xf]
        %v218 = vld [vmem:[#allocation5 + $0x38] sm:$0xf]
        %v219 = vld [vmem:[#allocation5 + $0x3c] sm:$0xf]
        %v220 = vld [vmem:[%s2] sm:$0x1]
        %v222 = vlaneseq
        %v223 = vshrl.u32 %v222, 7
        %v224 = vsub.s32 0, %v223
        %v225 = vrot.slane %v220, %v224
        %v243 = vunpack.c.l.b16 %v204
        %v244 = vunpack.c.l.b16 %v205
        %v245 = vunpack.c.l.b16 %v206
        %v246 = vunpack.c.l.b16 %v207
        %v247 = vunpack.c.l.b16 %v208
        %v248 = vunpack.c.l.b16 %v209
        %v249 = vunpack.c.l.b16 %v210
        %v250 = vunpack.c.l.b16 %v211
        %v251 = vunpack.c.l.b16 %v212
        %v252 = vunpack.c.l.b16 %v213
        %v253 = vunpack.c.l.b16 %v214
        %v254 = vunpack.c.l.b16 %v215
        %v255 = vunpack.c.l.b16 %v216
        %v256 = vunpack.c.l.b16 %v217
        %v257 = vunpack.c.l.b16 %v218
        %v258 = vunpack.c.l.b16 %v219
        %v259 = vpack.c.b16 %v244, %v243
        %v260 = vpack.c.b16 %v246, %v245
        %v261 = vpack.c.b16 %v248, %v247
        %v262 = vpack.c.b16 %v250, %v249
        %v263 = vpack.c.b16 %v252, %v251
        %v264 = vpack.c.b16 %v254, %v253
        %v265 = vpack.c.b16 %v256, %v255
        %v266 = vpack.c.b16 %v258, %v257
        %275 = vmatprep.subr.bf16.mxu0 0
        %276 = vmatpush1.bf16.msra.mxu0 %v259
        %277 = vmatprep.subr.bf16.mxu0 0
        %278 = vmatpush1.bf16.msra.mxu0 %v260
        %279 = vmatprep.subr.bf16.mxu0 0
        %280 = vmatpush1.bf16.msra.mxu0 %v261
        %281 = vmatprep.subr.bf16.mxu0 0
        %282 = vmatpush1.bf16.msra.mxu0 %v262
        %283 = vmatprep.subr.bf16.mxu0 0
        %284 = vmatpush1.bf16.msra.mxu0 %v263
        %285 = vmatprep.subr.bf16.mxu0 0
        %286 = vmatpush1.bf16.msra.mxu0 %v264
        %287 = vmatprep.subr.bf16.mxu0 0
        %288 = vmatpush1.bf16.msra.mxu0 %v265
        %289 = vmatprep.subr.bf16.mxu0 0
        %290 = vmatpush1.bf16.msra.mxu0 %v266
        %291 = vmatprep.subr.bf16.mxu0 0
        %292 = vmatpush1.bf16.msra.mxu0 0
        %293 = vmatprep.subr.bf16.mxu0 0
        %294 = vmatpush1.bf16.msra.mxu0 0
        %295 = vmatprep.subr.bf16.mxu0 0
        %296 = vmatpush1.bf16.msra.mxu0 0
        %297 = vmatprep.subr.bf16.mxu0 0
        %298 = vmatpush1.bf16.msra.mxu0 0
        %299 = vmatprep.subr.bf16.mxu0 0
        %300 = vmatpush1.bf16.msra.mxu0 0
        %301 = vmatprep.subr.bf16.mxu0 0
        %302 = vmatpush1.bf16.msra.mxu0 0
        %303 = vmatprep.subr.bf16.mxu0 0
        %304 = vmatpush1.bf16.msra.mxu0 0
        %305 = vmatprep.subr.bf16.mxu0 0
        %306 = vmatpush1.bf16.msra.mxu0 0
        %307 = vmatprep.mubr.bf16.mxu0 0
        %308 = vmatmul.mubr.bf16.gmra.mrb[0].mxu0 %v203
        %v309 = vpop.f32.mrb[0].mxu0
        %v310 = vadd.f32 %v225, %v309
        %v311 = vpop.f32.mrb[0].mxu0
        %v312 = vpop.f32.mrb[0].mxu0
        %v313 = vpop.f32.mrb[0].mxu0
        %314 = vdwg.mxu0
        %315 = vst [vmem:[%s200] sm:$0xff] %v310
        %s316 = sand.u32 %s97, 1
        %s317 = scalar_lea.sflag [#allocation4], %s316
        %s318 = sand.u32 %s97, 1
        %s319 = smul.addr %s318, 8
        %s320 = scalar_lea.vmem [#allocation7], %s319
        // Predicated region
        $region41: #{_linear.1} parent=31 // pred_check
          %p321 = pneg %p107
        $region42: #{_linear.1} parent=31 // pred_check_branch
          %323 = sbr.rel (%p321) target = $region44
        $region43: #{_linear.1} parent=31 // pred_region
          %s325 = ssub.s32 128, 128
          %326 = vsyncadd %s317, %s325
          %s327 = smul.addr %s21, 128
          %s328 = scalar_lea.hbm %s3, %s327
          %s330 = sshll.u32 %s320, 4
          %s331 = int_to_ptr.vmem [resolvable:$true] %s330
          %333 = dma.vmem_to_hbm [thread:$0]  %s331, 128, %s328, %s317
        $region44: #{_linear.1} parent=31 // pred_fallthru
          _
      $region32: #{_linear.1} parent=5 // pred_fallthru
        _
      %p334 = scmp.le.s32.totalorder 2, %s16
      // Predicated region
      $region45: #{_linear.1} parent=5 // pred_check
        %p335 = pneg %p334
      $region46: #{_linear.1} parent=5 // pred_check_branch
        %337 = sbr.rel (%p335) target = $region48
      $region47: #{_linear.1} parent=5 // pred_region
        %s338 = ssub.s32 %s16, 2
        // Predicated region
        $region49: #{_linear.1} parent=47 // pred_check
          %p339 = pneg %p113
        $region50: #{_linear.1} parent=47 // pred_check_branch
          %341 = sbr.rel (%p339) target = $region52
        $region51: #{_linear.1} parent=47 // pred_region
          %s342 = sand.u32 %s98, 1
          %s343 = scalar_lea.sflag [#allocation4], %s342
          %s344 = sand.u32 %s98, 1
          %s345 = smul.addr %s344, 8
          %s346 = scalar_lea.vmem [#allocation7], %s345
          %347 = dma.done %s343, 128
        $region52: #{_linear.1} parent=47 // pred_fallthru
          _
      $region48: #{_linear.1} parent=5 // pred_fallthru
        _
    $region6: #{_linear.1} parent=1 // loop_footer
      %s20 = sadd.s32 1, %s16
    $region7: #{_linear.1} parent=1 // loop_footer_branch
      %15 = sbr.rel target = $region3
    $region8: #{_linear.1} parent=1 // loop_exit
      _
    %348 = vsyncpa [#allocation3], 1
    %s349 = scalar_lea.sflag [#allocation3], 1
    %350 = vsyncpa %s349, 1
    %351 = vsyncpa [#allocation6], 1
    %352 = vsyncpa [#allocation4], 1
    %s353 = scalar_lea.sflag [#allocation4], 1
    %354 = vsyncpa %s353, 1

</llo_original>
